<compile_context>
chip_gen: v6e
topology: v6e:2x2x1
jax: 0.10.0
libtpu: 0.0.40
codegen_flags: <defaults>
</compile_context>

<pallas_src>
import jax
import jax.numpy as jnp
from jax.experimental import pallas as pl
from jax.experimental.pallas import tpu as pltpu


def _round_up(a: int, m: int) -> int:
    return ((a + m - 1) // m) * m


def _linear_kernel(x_ref, w_ref, b_ref, o_ref):
    # x_ref: (in_f, TILE_N) VMEM   w_ref: (in_f,) SMEM   b_ref: (1,) SMEM
    # o_ref: (1, TILE_N) VMEM
    in_f = x_ref.shape[0]
    acc = x_ref[0:1, :] * w_ref[0]
    for k in range(1, in_f):            # unrolled at trace time (in_f == 4)
        acc = acc + x_ref[k:k + 1, :] * w_ref[k]
    o_ref[...] = (acc + b_ref[0]).astype(o_ref.dtype)


def linear_forward(x: jax.Array, weight: jax.Array, bias: jax.Array,
                   *, tile_n: int = 32768) -> jax.Array:
    """x: (N, 4) f32, weight: (1, 4) f32 (PyTorch layout), bias: (1,) f32 -> (N, 1) f32."""
    n, in_f = x.shape
    out_f = weight.shape[0]
    assert out_f == 1

    # Lane-dense layout: features on sublanes, batch on lanes (done in wrapper).
    x_t = x.T                                           # (in_f, n)

    # Pick a lane tile: multiple of 128, capped at tile_n, pad batch to fit.
    n_rounded = _round_up(n, 128)
    tn = min(tile_n, n_rounded)
    n_pad = _round_up(n, tn)
    if n_pad != n:
        x_t = jnp.pad(x_t, ((0, 0), (0, n_pad - n)))    # zero-pad; padded cols discarded

    w = weight.reshape(in_f).astype(jnp.float32)        # (4,)  -> SMEM scalars
    b = bias.reshape(out_f).astype(jnp.float32)         # (1,)  -> SMEM scalar

    grid = (n_pad // tn,)
    out = pl.pallas_call(
        _linear_kernel,
        out_shape=jax.ShapeDtypeStruct((1, n_pad), x.dtype),
        grid_spec=pl.GridSpec(
            grid=grid,
            in_specs=[
                pl.BlockSpec((in_f, tn), lambda i: (0, i)),                 # x tile (VMEM)
                pl.BlockSpec(memory_space=pltpu.MemorySpace.SMEM),          # weights
                pl.BlockSpec(memory_space=pltpu.MemorySpace.SMEM),          # bias
            ],
            out_specs=pl.BlockSpec((1, tn), lambda i: (0, i)),
        ),
        compiler_params=pltpu.CompilerParams(
            dimension_semantics=("parallel",),   # lets v7x shard tiles across both TCs
        ),
    )(x_t, w, b)

    return out[:, :n].T                                  # back to (N, 1)


if __name__ == "__main__":
    key = jax.random.PRNGKey(0)
    kx, kw, kb = jax.random.split(key, 3)

    batch, in_features, out_features = 8, 4, 1

    # Deterministic parameter init (matches PyTorch Linear's U(-1/sqrt(fan_in), 1/sqrt(fan_in)))
    bound = 1.0 / jnp.sqrt(jnp.float32(in_features))
    weight = jax.random.uniform(
        kw, (out_features, in_features), jnp.float32, minval=-bound, maxval=bound
    )
    bias = jax.random.uniform(
        kb, (out_features,), jnp.float32, minval=-bound, maxval=bound
    )

    x = jax.random.normal(kx, (batch, in_features), jnp.float32)

    out = linear_forward(x, weight, bias)
    out = jax.block_until_ready(out)

    # Reference check in plain JAX
    ref = x @ weight.T + bias
    assert out.shape == (batch, out_features), out.shape
    assert jnp.allclose(out, ref, atol=1e-5, rtol=1e-5), (out, ref)

    print("KERNEL_OK")
</pallas_src>

<mosaic_0001>
module attributes {stable_mosaic.version = 11 : i64} {
  func.func @_linear_kernel(%arg0: i32, %arg1: memref<4x128xf32, #tpu.memory_space<vmem>>, %arg2: memref<4xf32, #tpu.memory_space<smem>>, %arg3: memref<1xf32, #tpu.memory_space<smem>>, %arg4: memref<1x128xf32, #tpu.memory_space<vmem>>) attributes {dimension_semantics = [#tpu.dimension_semantics<parallel>], iteration_bounds = array<i64: 1>, scalar_prefetch = 0 : i64, scratch_operands = 0 : i64, tpu.core_type = #tpu.core_type<tc>, window_params = [{transform_indices = @transform_0, window_bounds = array<i64: 4, 128>}, {transform_indices = @transform_1, window_bounds = array<i64: 4>}, {transform_indices = @transform_2, window_bounds = array<i64: 1>}, {transform_indices = @transform_3, window_bounds = array<i64: 1, 128>}]} {
    %c0 = arith.constant 0 : index
    %c0_0 = arith.constant 0 : index
    %0 = vector.load %arg1[%c0, %c0_0] : memref<4x128xf32, #tpu.memory_space<vmem>>, vector<1x128xf32>
    %c0_1 = arith.constant 0 : index
    %1 = memref.load %arg2[%c0_1] : memref<4xf32, #tpu.memory_space<smem>>
    %2 = vector.broadcast %1 : f32 to vector<1x128xf32>
    %3 = arith.mulf %0, %2 : vector<1x128xf32>
    %c1 = arith.constant 1 : index
    %c0_2 = arith.constant 0 : index
    %4 = vector.load %arg1[%c1, %c0_2] : memref<4x128xf32, #tpu.memory_space<vmem>>, vector<1x128xf32>
    %c1_3 = arith.constant 1 : index
    %5 = memref.load %arg2[%c1_3] : memref<4xf32, #tpu.memory_space<smem>>
    %6 = vector.broadcast %5 : f32 to vector<1x128xf32>
    %7 = arith.mulf %4, %6 : vector<1x128xf32>
    %8 = arith.addf %3, %7 : vector<1x128xf32>
    %c2 = arith.constant 2 : index
    %c0_4 = arith.constant 0 : index
    %9 = vector.load %arg1[%c2, %c0_4] : memref<4x128xf32, #tpu.memory_space<vmem>>, vector<1x128xf32>
    %c2_5 = arith.constant 2 : index
    %10 = memref.load %arg2[%c2_5] : memref<4xf32, #tpu.memory_space<smem>>
    %11 = vector.broadcast %10 : f32 to vector<1x128xf32>
    %12 = arith.mulf %9, %11 : vector<1x128xf32>
    %13 = arith.addf %8, %12 : vector<1x128xf32>
    %c3 = arith.constant 3 : index
    %c0_6 = arith.constant 0 : index
    %14 = vector.load %arg1[%c3, %c0_6] : memref<4x128xf32, #tpu.memory_space<vmem>>, vector<1x128xf32>
    %c3_7 = arith.constant 3 : index
    %15 = memref.load %arg2[%c3_7] : memref<4xf32, #tpu.memory_space<smem>>
    %16 = vector.broadcast %15 : f32 to vector<1x128xf32>
    %17 = arith.mulf %14, %16 : vector<1x128xf32>
    %18 = arith.addf %13, %17 : vector<1x128xf32>
    %c0_8 = arith.constant 0 : index
    %19 = memref.load %arg3[%c0_8] : memref<1xf32, #tpu.memory_space<smem>>
    %20 = vector.broadcast %19 : f32 to vector<1x128xf32>
    %21 = arith.addf %18, %20 : vector<1x128xf32>
    %c0_9 = arith.constant 0 : index
    %c0_10 = arith.constant 0 : index
    %22 = vector.load %arg4[%c0_9, %c0_10] : memref<1x128xf32, #tpu.memory_space<vmem>>, vector<1x128xf32>
    tpu.vector_store %arg4[%c0_9, %c0_10], %21 {strides = array<i32>} : memref<1x128xf32, #tpu.memory_space<vmem>>, vector<1x128xf32>,
    return
  }
  func.func @transform_0(%arg0: i32) -> (i32, i32) {
    %c0_i32 = arith.constant 0 : i32
    %c0_i32_0 = arith.constant 0 : i32
    return %c0_i32, %arg0 : i32, i32
  }
  func.func @transform_1(%arg0: i32) -> i32 {
    %c0_i32 = arith.constant 0 : i32
    %c0_i32_0 = arith.constant 0 : i32
    return %c0_i32 : i32
  }
  func.func @transform_2(%arg0: i32) -> i32 {
    %c0_i32 = arith.constant 0 : i32
    %c0_i32_0 = arith.constant 0 : i32
    return %c0_i32 : i32
  }
  func.func @transform_3(%arg0: i32) -> (i32, i32) {
    %c0_i32 = arith.constant 0 : i32
    %c0_i32_0 = arith.constant 0 : i32
    return %c0_i32, %arg0 : i32, i32
  }
}

</mosaic_0001>

<llo_original>
// kernel: tpu_custom_call.1
$region0: #{tpu_custom_call.1}
  #allocation0 [shape = 'u32[]', space=smem, size = 0x4, offset = 0x4, fixed_abs, tag = 'smem constant byte address 0x4 - core index']
  #allocation1 [shape = 'u32[144,128]{1,0:T(1,128)}', space=vmem, size = 0x12000, scoped, tag = 'internal scratch']
  #allocation2 [shape = 'f32[1]{0:T(128)S(6)}', space=smem, size = 0x200, scoped, tag = 'scoped memory for tpu_custom_call.1']
  %s0 = inlined_call_operand.hbm [shape: f32[4,128], index: 0, kind: input, shape index: {}]
  %s1 = inlined_call_operand.vmem [shape: f32[4], index: 1, kind: input, shape index: {}]
  %s2 = inlined_call_operand.<no memory space> [shape: f32[1], index: 2, kind: input, shape index: {}]
  %s3 = inlined_call_operand.hbm [shape: f32[1,128], index: 3, kind: output, shape index: {}]
  %s4 = sld [smem:[#allocation0]]
  $region30: #{tpu_custom_call.1} parent=0
    _
  %s6 = ssub.s32 1, %s4
  %s7 = scalar_select 0, %s6, %s4
  %8 = sst [smem:[#allocation2]] %s2
  $region1: #{tpu_custom_call.1} parent=0
    #allocation3 [shape = 'u8[2048]{0}', space=vmem, size = 0x800, scoped, tag = 'input window, operand 0, single buffered']
    #allocation4 [shape = 's32[1]{0}', space=sflag, size = 0x4, scoped, tag = 'scoped memory for tpu_custom_call.1']
    #allocation5 [shape = 's32[1]{0}', space=sflag, size = 0x4, scoped, tag = 'scoped memory for tpu_custom_call.1']
    #allocation6 [shape = 's32[1]{0}', space=sflag, size = 0x4, scoped, tag = 'scoped memory for tpu_custom_call.1']
    #allocation7 [shape = 'u8[512]{0}', space=smem, size = 0x200, scoped, tag = 'input window, operand 1, single buffered']
    #allocation8 [shape = 'u8[512]{0}', space=vmem, size = 0x400, scoped, tag = 'output window, operand 0, single buffered']
    %9 = vsyncpa [#allocation4], 0
    %10 = vsyncpa [#allocation6], 0
    %11 = vsyncpa [#allocation5], 0
    // Predicated region
    $region2: #{tpu_custom_call.1} parent=1 // pred_check
      _
    $region3: #{tpu_custom_call.1} parent=1 // pred_check_branch
      %13 = sbr.rel (0) target = $region5
    $region4: #{tpu_custom_call.1} parent=1 // pred_region
      %s15 = ssub.s32 64, 64
      %16 = vsyncadd [#allocation4], %s15
      %s18 = sshll.u32 [#allocation3], 4
      %s19 = int_to_ptr.vmem [resolvable:$true] %s18
      %21 = dma.hbm_to_vmem [thread:$0]  %s0, 64, %s19, [#allocation4]
    $region5: #{tpu_custom_call.1} parent=1 // pred_fallthru
      _
    // Predicated region
    $region6: #{tpu_custom_call.1} parent=1 // pred_check
      _
    $region7: #{tpu_custom_call.1} parent=1 // pred_check_branch
      %23 = sbr.rel (0) target = $region9
    $region8: #{tpu_custom_call.1} parent=1 // pred_region
      %s25 = ssub.s32 16, 16
      %26 = vsyncadd [#allocation6], %s25
      %s28 = sshll.u32 %s1, 4
      %s29 = int_to_ptr.vmem [resolvable:$true] %s28
      %31 = dma.vmem_to_smem %s29, 16, [#allocation7], [#allocation6]
    $region9: #{tpu_custom_call.1} parent=1 // pred_fallthru
      _
    // Predicated region
    $region10: #{tpu_custom_call.1} parent=1 // pred_check
      _
    $region11: #{tpu_custom_call.1} parent=1 // pred_check_branch
      %33 = sbr.rel (0) target = $region13
    $region12: #{tpu_custom_call.1} parent=1 // pred_region
      _
    $region13: #{tpu_custom_call.1} parent=1 // pred_fallthru
      _
    // Predicated region
    $region14: #{tpu_custom_call.1} parent=1 // pred_check
      _
    $region15: #{tpu_custom_call.1} parent=1 // pred_check_branch
      %35 = sbr.rel (0) target = $region17
    $region16: #{tpu_custom_call.1} parent=1 // pred_region
      %36 = dma.done [#allocation4], 64
    $region17: #{tpu_custom_call.1} parent=1 // pred_fallthru
      _
    // Predicated region
    $region18: #{tpu_custom_call.1} parent=1 // pred_check
      _
    $region19: #{tpu_custom_call.1} parent=1 // pred_check_branch
      %38 = sbr.rel (0) target = $region21
    $region20: #{tpu_custom_call.1} parent=1 // pred_region
      %39 = dma.done [#allocation6], 16
    $region21: #{tpu_custom_call.1} parent=1 // pred_fallthru
      _
    %40 = sfence
    %v41 = vld [vmem:[#allocation3] sm:$0x1]
    %s42 = sld [smem:[#allocation7]]
    %v43 = vstv %s42
    %v44 = vmul.f32 %v41, %v43
    %v45 = vld [vmem:[#allocation3 + $0x1] sm:$0x1]
    %s46 = sld [smem:[#allocation7 + $0x1]]
    %v47 = vstv %s46
    %v48 = vmul.f32 %v45, %v47
    %v49 = vadd.f32 %v44, %v48
    %v50 = vld [vmem:[#allocation3 + $0x2] sm:$0x1]
    %s51 = sld [smem:[#allocation7 + $0x2]]
    %v52 = vstv %s51
    %v53 = vmul.f32 %v50, %v52
    %v54 = vadd.f32 %v49, %v53
    %v55 = vld [vmem:[#allocation3 + $0x3] sm:$0x1]
    %s56 = sld [smem:[#allocation7 + $0x3]]
    %v57 = vstv %s56
    %v58 = vmul.f32 %v55, %v57
    %v59 = vadd.f32 %v54, %v58
    %s60 = sld [smem:[#allocation2]]
    %v61 = vstv %s60
    %v62 = vadd.f32 %v59, %v61
    %63 = vst [vmem:[#allocation8] sm:$0x1] %v62
    // Predicated region
    $region22: #{tpu_custom_call.1} parent=1 // pred_check
      _
    $region23: #{tpu_custom_call.1} parent=1 // pred_check_branch
      %65 = sbr.rel (0) target = $region25
    $region24: #{tpu_custom_call.1} parent=1 // pred_region
      %s67 = ssub.s32 16, 16
      %68 = vsyncadd [#allocation5], %s67
      %s70 = sshll.u32 [#allocation8], 4
      %s71 = int_to_ptr.vmem [resolvable:$true] %s70
      %73 = dma.vmem_to_hbm [thread:$0]  %s71, 16, %s3, [#allocation5]
    $region25: #{tpu_custom_call.1} parent=1 // pred_fallthru
      _
    // Predicated region
    $region26: #{tpu_custom_call.1} parent=1 // pred_check
      _
    $region27: #{tpu_custom_call.1} parent=1 // pred_check_branch
      %75 = sbr.rel (0) target = $region29
    $region28: #{tpu_custom_call.1} parent=1 // pred_region
      %76 = dma.done [#allocation5], 16
    $region29: #{tpu_custom_call.1} parent=1 // pred_fallthru
      _
    %77 = vsyncpa [#allocation4], 1
    %78 = vsyncpa [#allocation5], 1
    %79 = vsyncpa [#allocation6], 1

</llo_original>
